<compile_context>
chip_gen: v5e
topology: v5e:2x2
jax: 0.10.0
libtpu: 0.0.40
codegen_flags: <defaults>
</compile_context>

<pallas_src>
import functools

import jax
import jax.numpy as jnp
from jax.experimental import pallas as pl
from jax.experimental.pallas import tpu as pltpu

_LANE = 128      # lane width  (last-dim block granularity)
_SUBLANE = 8     # sublane width (second-to-last-dim block granularity)


def _round_up(x: int, m: int) -> int:
    return (x + m - 1) // m * m


def _vmem_budget_bytes() -> int:
    """Generation-aware VMEM budget (v7x: 64 MiB/TC, v5e/v6e: 128 MiB)."""
    cap = None
    try:
        cap = int(pltpu.get_tpu_info().vmem_capacity_bytes)
    except Exception:
        cap = None
    if cap is None:
        try:
            kind = jax.devices()[0].device_kind.lower()
        except Exception:
            kind = ""
        cap = 64 * 1024 * 1024 if "v7" in kind else 128 * 1024 * 1024
    return (cap * 7) // 8          # ~12.5% headroom for compiler scratch


def _mxu_lane_multiple() -> int:
    """v6e/v7x MXUs are 256 wide -> pad feature dims to 256 there, 128 elsewhere."""
    try:
        kind = jax.devices()[0].device_kind.lower()
    except Exception:
        kind = ""
    return 256 if ("v6" in kind or "v7" in kind) else 128


def _mlp_kernel(x_ref, w1_ref, b1_ref, w2_ref, b2_ref, o_ref, acc_ref):
    """One (batch tile, hidden block) step of the fused two-layer MLP."""
    k = pl.program_id(1)

    @pl.when(k == 0)
    def _init():
        acc_ref[...] = jnp.zeros_like(acc_ref)

    # Layer 1, hidden-column block: (tb, in_pad) @ (in_pad, tk) on the MXU,
    # f32 accumulation even for bf16 inputs.
    h = jnp.dot(x_ref[...], w1_ref[...], preferred_element_type=jnp.float32)
    # Bias + ReLU on the VPU in f32 (hidden under the MXU pushes).
    h = jnp.maximum(h + b1_ref[...], 0.0)

    # Layer 2 partial product: (tb, tk) @ (tk, out_pad), accumulated over k.
    acc_ref[...] += jnp.dot(h.astype(w2_ref.dtype), w2_ref[...],
                            preferred_element_type=jnp.float32)

    @pl.when(k == pl.num_programs(1) - 1)
    def _finalize():
        o_ref[...] = (acc_ref[...] + b2_ref[...]).astype(o_ref.dtype)


def _plan_tiles(b_pad, in_pad, out_pad, cdt_bytes, out_bytes,
                vmem_budget, block_b, block_k):
    """Pick (batch tile, hidden tile, num hidden blocks) that fit the VMEM budget."""
    if block_b is None:
        block_b = 256 if vmem_budget <= 64 * 1024 * 1024 else 512
    tb = min(_round_up(block_b, _SUBLANE), b_pad)

    def vmem_bytes(tb_, tk_, nk_):
        wbuf = 1 if nk_ == 1 else 2                       # resident vs streamed
        return ((in_pad * tk_ + tk_ * out_pad) * cdt_bytes * wbuf   # W1/W2 blocks
                + tk_ * 4 * wbuf + out_pad * 4                      # b1 block, b2
                + tb_ * in_pad * cdt_bytes * 2                      # x (double-buffered)
                + tb_ * out_pad * out_bytes * 2                     # out (double-buffered)
                + tb_ * out_pad * 4                                 # f32 accumulator
                + tb_ * tk_ * 4)                                    # f32 hidden block

    if block_k is not None:
        if block_k % _LANE != 0 or in_pad % block_k != 0:
            raise ValueError("block_k must be a multiple of 128 dividing the "
                             f"padded hidden dim ({in_pad}); got {block_k}")
        tk = block_k
    else:
        tk = in_pad                                        # prefer fully resident weights
        if vmem_bytes(tb, tk, 1) > vmem_budget:
            m = in_pad // _LANE
            for nk_try in range(2, m + 1):
                if m % nk_try:
                    continue                               # keep tk a multiple of 128
                tk = in_pad // nk_try
                if vmem_bytes(tb, tk, nk_try) <= vmem_budget:
                    break
    nk = in_pad // tk
    # Last resort: shrink the batch tile.
    while tb > _SUBLANE and vmem_bytes(tb, tk, nk) > vmem_budget:
        tb = max(_SUBLANE, _round_up(tb // 2, _SUBLANE))
    return tb, tk, nk


def prepare_params(w1, b1, w2, b2, *, compute_dtype=jnp.bfloat16, lane_multiple=None):
    """Pad params to MXU-friendly shapes and cast weights to the MXU dtype ONCE.

    w1: [in_dim, in_dim]   (PyTorch layer1.weight transposed to [in, out])
    b1: [in_dim]
    w2: [in_dim, out_dim]  (PyTorch layer2.weight transposed)
    b2: [out_dim]
    Zero-padding is exact: padded x features hit zero W1 rows, padded hidden
    columns are ReLU(0 + 0) = 0 and hit zero W2 rows, padded output columns are
    sliced off after the kernel.  Biases stay f32 (added to f32 accumulators).
    """
    if lane_multiple is None:
        lane_multiple = _mxu_lane_multiple()
    in_dim = w1.shape[0]
    out_dim = w2.shape[1]
    in_pad = _round_up(in_dim, lane_multiple)
    out_pad = _round_up(out_dim, lane_multiple)
    w1p = jnp.pad(w1, ((0, in_pad - in_dim), (0, in_pad - in_dim))).astype(compute_dtype)
    b1p = jnp.pad(b1, (0, in_pad - in_dim)).astype(jnp.float32).reshape(1, in_pad)
    w2p = jnp.pad(w2, ((0, in_pad - in_dim), (0, out_pad - out_dim))).astype(compute_dtype)
    b2p = jnp.pad(b2, (0, out_pad - out_dim)).astype(jnp.float32).reshape(1, out_pad)
    return w1p, b1p, w2p, b2p


@functools.partial(jax.jit, static_argnames=("out_dim", "block_b", "block_k"))
def neural_net_forward(x, w1p, b1p, w2p, b2p, *, out_dim, block_b=None, block_k=None):
    """Pallas forward pass of NeuralNet.

    x      : [B, in_dim] (any float dtype; cast to the weights' compute dtype)
    w1p..b2p: pre-padded params from prepare_params()
    returns: [B, out_dim] in x.dtype
    """
    B, in_dim = x.shape
    in_pad = w1p.shape[0]
    out_pad = w2p.shape[1]
    compute_dtype = w1p.dtype
    out_dtype = x.dtype
    cdt = jnp.dtype(compute_dtype).itemsize
    odt = jnp.dtype(out_dtype).itemsize

    vmem_budget = _vmem_budget_bytes()
    b_pad = _round_up(B, _SUBLANE)     # only 0..7 dead tail rows, never a full tile
    tb, tk, nk = _plan_tiles(b_pad, in_pad, out_pad, cdt, odt,
                             vmem_budget, block_b, block_k)
    nb = pl.cdiv(b_pad, tb)

    # Pad / cast activations only when needed (weights are pre-padded at init).
    xp = x
    if (b_pad, in_pad) != x.shape:
        xp = jnp.pad(xp, ((0, b_pad - B), (0, in_pad - in_dim)))
    if xp.dtype != compute_dtype:
        xp = xp.astype(compute_dtype)      # bf16 into the MXU

    # Resident operands are single-buffered; streamed operands keep the default
    # double-buffering so the next block prefetches under compute.
    resident = pl.Buffered(1)
    w_mode = resident if nk == 1 else None

    weight_reads = 1 if nk == 1 else nb
    flops = 2 * b_pad * in_pad * (in_pad + out_pad)
    bytes_accessed = (b_pad * in_pad * cdt
                      + weight_reads * (in_pad * in_pad + in_pad * out_pad) * cdt
                      + (in_pad + out_pad) * 4
                      + b_pad * out_pad * odt)

    out_padded = pl.pallas_call(
        _mlp_kernel,
        out_shape=jax.ShapeDtypeStruct((b_pad, out_pad), out_dtype),
        grid_spec=pltpu.PrefetchScalarGridSpec(
            num_scalar_prefetch=0,
            grid=(nb, nk),
            in_specs=[
                # x: one batch tile, constant across the k loop, streamed over i.
                pl.BlockSpec((tb, in_pad), lambda i, k: (i, 0)),
                # W1 hidden-column block, b1 block, W2 hidden-row block.
                pl.BlockSpec((in_pad, tk), lambda i, k: (0, k), pipeline_mode=w_mode),
                pl.BlockSpec((1, tk), lambda i, k: (0, k), pipeline_mode=w_mode),
                pl.BlockSpec((tk, out_pad), lambda i, k: (k, 0), pipeline_mode=w_mode),
                # b2: constant index -> always single-buffered.
                pl.BlockSpec((1, out_pad), lambda i, k: (0, 0), pipeline_mode=resident),
            ],
            out_specs=pl.BlockSpec((tb, out_pad), lambda i, k: (i, 0)),
            scratch_shapes=[pltpu.VMEM((tb, out_pad), jnp.float32)],
        ),
        compiler_params=pltpu.CompilerParams(
            # Batch axis is embarrassingly parallel (megacore); hidden-dim
            # reduction axis is last and "arbitrary".
            dimension_semantics=("parallel", "arbitrary"),
            vmem_limit_bytes=int(vmem_budget),
        ),
        cost_estimate=pl.CostEstimate(
            flops=int(flops), transcendentals=0, bytes_accessed=int(bytes_accessed)),
    )(xp, w1p, b1p, w2p, b2p)

    return out_padded[:B, :out_dim]


def init_params(key, in_dim, out_dim, dtype=jnp.float32):
    """Deterministic init mirroring nn.Linear's U(-1/sqrt(fan_in), 1/sqrt(fan_in))."""
    k1, k2, k3, k4 = jax.random.split(key, 4)
    bound1 = 1.0 / jnp.sqrt(in_dim)
    # PyTorch stores weight as [out, in]; we keep [in, out] for the kernel.
    w1 = jax.random.uniform(k1, (in_dim, in_dim), dtype, -bound1, bound1)
    b1 = jax.random.uniform(k2, (in_dim,), dtype, -bound1, bound1)
    bound2 = 1.0 / jnp.sqrt(in_dim)
    w2 = jax.random.uniform(k3, (in_dim, out_dim), dtype, -bound2, bound2)
    b2 = jax.random.uniform(k4, (out_dim,), dtype, -bound2, bound2)
    return w1, b1, w2, b2


if __name__ == "__main__":
    key = jax.random.PRNGKey(0)
    k_x, k_p = jax.random.split(key)

    # Small shapes consistent with the module (toy problem; the kernel itself
    # scales to large B / in_dim by streaming batch tiles and hidden blocks).
    in_dim, out_dim = 32, 4
    w1, b1, w2, b2 = init_params(k_p, in_dim, out_dim)
    # Pad + bf16-cast the weights ONCE (hoisted out of the forward path).
    params = prepare_params(w1, b1, w2, b2)

    def ref_fwd(x):   # plain-JAX f32 reference, same math as the PyTorch module
        return jnp.maximum(x @ w1 + b1, 0.0) @ w2 + b2

    # bf16 MXU inputs with f32 accumulation -> loosened tolerance vs f32 ref.
    TOL = dict(atol=3e-2, rtol=3e-2)

    # Case 1: single batch tile, fully resident (single-buffered) weights.
    x1 = jax.random.normal(k_x, (8, in_dim), jnp.float32)
    y1 = jax.block_until_ready(neural_net_forward(x1, *params, out_dim=out_dim))
    assert y1.shape == (8, out_dim)
    assert jnp.allclose(y1, ref_fwd(x1), **TOL), "case-1 mismatch"

    # Case 2: multi-tile batch with a ragged tail + K-streamed hidden dim
    # (exercises the accumulator / pl.when init-finalize path).
    x2 = jax.random.normal(jax.random.fold_in(k_x, 1), (40, in_dim), jnp.float32)
    y2 = jax.block_until_ready(
        neural_net_forward(x2, *params, out_dim=out_dim, block_b=16, block_k=128))
    assert y2.shape == (40, out_dim)
    assert jnp.allclose(y2, ref_fwd(x2), **TOL), "case-2 mismatch"

    print("KERNEL_OK")
</pallas_src>

<mosaic_0001>
module attributes {stable_mosaic.version = 11 : i64} {
  func.func @_mlp_kernel(%arg0: i32, %arg1: i32, %arg2: memref<8x128xbf16, #tpu.memory_space<vmem>>, %arg3: memref<128x128xbf16, #tpu.memory_space<vmem>>, %arg4: memref<1x128xf32, #tpu.memory_space<vmem>>, %arg5: memref<128x128xbf16, #tpu.memory_space<vmem>>, %arg6: memref<1x128xf32, #tpu.memory_space<vmem>>, %arg7: memref<8x128xf32, #tpu.memory_space<vmem>>, %arg8: memref<8x128xf32, #tpu.memory_space<vmem>>) attributes {dimension_semantics = [#tpu.dimension_semantics<parallel>, #tpu.dimension_semantics<arbitrary>], iteration_bounds = array<i64: 1, 1>, scalar_prefetch = 0 : i64, scratch_operands = 1 : i64, tpu.core_type = #tpu.core_type<tc>, window_params = [{transform_indices = @transform_0, window_bounds = array<i64: 8, 128>}, {pipeline_mode = #tpu.pipeline_mode<synchronous>, transform_indices = @transform_1, window_bounds = array<i64: 128, 128>}, {pipeline_mode = #tpu.pipeline_mode<synchronous>, transform_indices = @transform_2, window_bounds = array<i64: 1, 128>}, {pipeline_mode = #tpu.pipeline_mode<synchronous>, transform_indices = @transform_3, window_bounds = array<i64: 128, 128>}, {pipeline_mode = #tpu.pipeline_mode<synchronous>, transform_indices = @transform_4, window_bounds = array<i64: 1, 128>}, {transform_indices = @transform_5, window_bounds = array<i64: 8, 128>}]} {
    %c0_i32 = arith.constant 0 : i32
    %0 = arith.cmpi eq, %arg1, %c0_i32 : i32
    %1 = arith.extui %0 : i1 to i32
    %c0_i32_0 = arith.constant 0 : i32
    %2 = arith.cmpi ne, %1, %c0_i32_0 : i32
    scf.if %2 {
      %cst_16 = arith.constant 0.000000e+00 : f32
      %20 = vector.broadcast %cst_16 : f32 to vector<8x128xf32>
      %c0_17 = arith.constant 0 : index
      %c0_18 = arith.constant 0 : index
      %21 = vector.load %arg8[%c0_17, %c0_18] : memref<8x128xf32, #tpu.memory_space<vmem>>, vector<8x128xf32>
      tpu.vector_store %arg8[%c0_17, %c0_18], %20 {strides = array<i32>} : memref<8x128xf32, #tpu.memory_space<vmem>>, vector<8x128xf32>,
    } else {
    }
    %c0 = arith.constant 0 : index
    %c0_1 = arith.constant 0 : index
    %3 = vector.load %arg2[%c0, %c0_1] : memref<8x128xbf16, #tpu.memory_space<vmem>>, vector<8x128xbf16>
    %c0_2 = arith.constant 0 : index
    %c0_3 = arith.constant 0 : index
    %4 = vector.load %arg3[%c0_2, %c0_3] : memref<128x128xbf16, #tpu.memory_space<vmem>>, vector<128x128xbf16>
    %cst = arith.constant dense<0.000000e+00> : vector<8x128xf32>
    %5 = tpu.matmul %3, %4, %cst {dimension_numbers = #tpu.dot_dimension_numbers<[1], [0], [0], [1], [0, 0, 1, 1], [], []>} : vector<8x128xbf16>, vector<128x128xbf16>, vector<8x128xf32> -> vector<8x128xf32>
    %c0_4 = arith.constant 0 : index
    %c0_5 = arith.constant 0 : index
    %6 = vector.load %arg4[%c0_4, %c0_5] : memref<1x128xf32, #tpu.memory_space<vmem>>, vector<1x128xf32>
    %7 = vector.broadcast %6 : vector<1x128xf32> to vector<8x128xf32>
    %8 = arith.addf %5, %7 : vector<8x128xf32>
    %cst_6 = arith.constant 0.000000e+00 : f32
    %9 = vector.broadcast %cst_6 : f32 to vector<8x128xf32>
    %10 = arith.maximumf %8, %9 : vector<8x128xf32>
    %c0_7 = arith.constant 0 : index
    %c0_8 = arith.constant 0 : index
    %11 = vector.load %arg8[%c0_7, %c0_8] : memref<8x128xf32, #tpu.memory_space<vmem>>, vector<8x128xf32>
    %12 = arith.truncf %10 : vector<8x128xf32> to vector<8x128xbf16>
    %c0_9 = arith.constant 0 : index
    %c0_10 = arith.constant 0 : index
    %13 = vector.load %arg5[%c0_9, %c0_10] : memref<128x128xbf16, #tpu.memory_space<vmem>>, vector<128x128xbf16>
    %cst_11 = arith.constant dense<0.000000e+00> : vector<8x128xf32>
    %14 = tpu.matmul %12, %13, %cst_11 {dimension_numbers = #tpu.dot_dimension_numbers<[1], [0], [0], [1], [0, 0, 1, 1], [], []>} : vector<8x128xbf16>, vector<128x128xbf16>, vector<8x128xf32> -> vector<8x128xf32>
    %15 = arith.addf %11, %14 : vector<8x128xf32>
    %c0_12 = arith.constant 0 : index
    %c0_13 = arith.constant 0 : index
    %16 = vector.load %arg8[%c0_12, %c0_13] : memref<8x128xf32, #tpu.memory_space<vmem>>, vector<8x128xf32>
    tpu.vector_store %arg8[%c0_12, %c0_13], %15 {strides = array<i32>} : memref<8x128xf32, #tpu.memory_space<vmem>>, vector<8x128xf32>,
    %c0_i32_14 = arith.constant 0 : i32
    %17 = arith.cmpi eq, %arg1, %c0_i32_14 : i32
    %18 = arith.extui %17 : i1 to i32
    %c0_i32_15 = arith.constant 0 : i32
    %19 = arith.cmpi ne, %18, %c0_i32_15 : i32
    scf.if %19 {
      %c0_16 = arith.constant 0 : index
      %c0_17 = arith.constant 0 : index
      %20 = vector.load %arg8[%c0_16, %c0_17] : memref<8x128xf32, #tpu.memory_space<vmem>>, vector<8x128xf32>
      %c0_18 = arith.constant 0 : index
      %c0_19 = arith.constant 0 : index
      %21 = vector.load %arg6[%c0_18, %c0_19] : memref<1x128xf32, #tpu.memory_space<vmem>>, vector<1x128xf32>
      %22 = vector.broadcast %21 : vector<1x128xf32> to vector<8x128xf32>
      %23 = arith.addf %20, %22 : vector<8x128xf32>
      %c0_20 = arith.constant 0 : index
      %c0_21 = arith.constant 0 : index
      %24 = vector.load %arg7[%c0_20, %c0_21] : memref<8x128xf32, #tpu.memory_space<vmem>>, vector<8x128xf32>
      tpu.vector_store %arg7[%c0_20, %c0_21], %23 {strides = array<i32>} : memref<8x128xf32, #tpu.memory_space<vmem>>, vector<8x128xf32>,
    } else {
    }
    return
  }
  func.func @transform_0(%arg0: i32, %arg1: i32) -> (i32, i32) {
    %c0_i32 = arith.constant 0 : i32
    %c0_i32_0 = arith.constant 0 : i32
    return %arg0, %c0_i32 : i32, i32
  }
  func.func @transform_1(%arg0: i32, %arg1: i32) -> (i32, i32) {
    %c0_i32 = arith.constant 0 : i32
    %c0_i32_0 = arith.constant 0 : i32
    return %c0_i32, %arg1 : i32, i32
  }
  func.func @transform_2(%arg0: i32, %arg1: i32) -> (i32, i32) {
    %c0_i32 = arith.constant 0 : i32
    %c0_i32_0 = arith.constant 0 : i32
    return %c0_i32, %arg1 : i32, i32
  }
  func.func @transform_3(%arg0: i32, %arg1: i32) -> (i32, i32) {
    %c0_i32 = arith.constant 0 : i32
    %c0_i32_0 = arith.constant 0 : i32
    return %arg1, %c0_i32 : i32, i32
  }
  func.func @transform_4(%arg0: i32, %arg1: i32) -> (i32, i32) {
    %c0_i32 = arith.constant 0 : i32
    %c0_i32_0 = arith.constant 0 : i32
    %c0_i32_1 = arith.constant 0 : i32
    return %c0_i32, %c0_i32_0 : i32, i32
  }
  func.func @transform_5(%arg0: i32, %arg1: i32) -> (i32, i32) {
    %c0_i32 = arith.constant 0 : i32
    %c0_i32_0 = arith.constant 0 : i32
    return %arg0, %c0_i32 : i32, i32
  }
}

</mosaic_0001>

<llo_original>
// kernel: neural_net_forward.1
$region0: #{neural_net_forward.1}
  #allocation0 [shape = 'u32[]', space=smem, size = 0x4, offset = 0x4, fixed_abs, tag = 'smem constant byte address 0x4 - core index']
  #allocation1 [shape = 'u32[72,128]{1,0:T(1,128)}', space=vmem, size = 0x9000, scoped, tag = 'internal scratch']
  #allocation2 [shape = 'f32[8,128]{1,0:T(8,128)}', space=vmem, size = 0x1000, scoped, tag = 'scratch operand']
  %s0 = inlined_call_operand.vmem [shape: bf16[8,128], index: 0, kind: input, shape index: {}]
  %s1 = inlined_call_operand.hbm [shape: bf16[128,128], index: 1, kind: input, shape index: {}]
  %s2 = inlined_call_operand.vmem [shape: f32[1,128], index: 2, kind: input, shape index: {}]
  %s3 = inlined_call_operand.hbm [shape: bf16[128,128], index: 3, kind: input, shape index: {}]
  %s4 = inlined_call_operand.vmem [shape: f32[1,128], index: 4, kind: input, shape index: {}]
  %s5 = inlined_call_operand.vmem [shape: f32[8,128], index: 5, kind: output, shape index: {}]
  %s6 = sld [smem:[#allocation0]]
  $region46: #{neural_net_forward.1} parent=0
    _
  %s8 = ssub.s32 1, %s6
  %s9 = scalar_select 0, %s8, %s6
  $region1: #{neural_net_forward.1} parent=0
    #allocation3 [shape = 'u8[32768]{0}', space=vmem, size = 0x8000, scoped, tag = 'input window, operand 1, single buffered']
    #allocation4 [shape = 's32[1]{0}', space=sflag, size = 0x4, scoped, tag = 'scoped memory for neural_net_forward.1']
    #allocation5 [shape = 'u8[32768]{0}', space=vmem, size = 0x8000, scoped, tag = 'input window, operand 3, single buffered']
    #allocation6 [shape = 's32[1]{0}', space=sflag, size = 0x4, scoped, tag = 'scoped memory for neural_net_forward.1']
    %10 = vsyncpa [#allocation4], 0
    %11 = vsyncpa [#allocation6], 0
    // Predicated region
    $region2: #{neural_net_forward.1} parent=1 // pred_check
      _
    $region3: #{neural_net_forward.1} parent=1 // pred_check_branch
      %13 = sbr.rel (0) target = $region5
    $region4: #{neural_net_forward.1} parent=1 // pred_region
      _
    $region5: #{neural_net_forward.1} parent=1 // pred_fallthru
      _
    // Predicated region
    $region6: #{neural_net_forward.1} parent=1 // pred_check
      _
    $region7: #{neural_net_forward.1} parent=1 // pred_check_branch
      %15 = sbr.rel (0) target = $region9
    $region8: #{neural_net_forward.1} parent=1 // pred_region
      %17 = vsyncadd [#allocation4], 0
      %s18 = sshll.u32 %s1, 4
      %s19 = int_to_ptr.hbm [resolvable:$true] %s18
      %s20 = sshll.u32 [#allocation3], 4
      %s21 = int_to_ptr.vmem [resolvable:$true] %s20
      %26 = dma.hbm_to_vmem [thread:$0]  %s19, 1024, %s21, [#allocation4], 64, 64, 4
    $region9: #{neural_net_forward.1} parent=1 // pred_fallthru
      _
    // Predicated region
    $region10: #{neural_net_forward.1} parent=1 // pred_check
      _
    $region11: #{neural_net_forward.1} parent=1 // pred_check_branch
      %28 = sbr.rel (0) target = $region13
    $region12: #{neural_net_forward.1} parent=1 // pred_region
      _
    $region13: #{neural_net_forward.1} parent=1 // pred_fallthru
      _
    // Predicated region
    $region14: #{neural_net_forward.1} parent=1 // pred_check
      _
    $region15: #{neural_net_forward.1} parent=1 // pred_check_branch
      %30 = sbr.rel (0) target = $region17
    $region16: #{neural_net_forward.1} parent=1 // pred_region
      %32 = vsyncadd [#allocation6], 0
      %s33 = sshll.u32 %s3, 4
      %s34 = int_to_ptr.hbm [resolvable:$true] %s33
      %s35 = sshll.u32 [#allocation5], 4
      %s36 = int_to_ptr.vmem [resolvable:$true] %s35
      %41 = dma.hbm_to_vmem [thread:$0]  %s34, 1024, %s36, [#allocation6], 64, 64, 4
    $region17: #{neural_net_forward.1} parent=1 // pred_fallthru
      _
    // Predicated region
    $region18: #{neural_net_forward.1} parent=1 // pred_check
      _
    $region19: #{neural_net_forward.1} parent=1 // pred_check_branch
      %43 = sbr.rel (0) target = $region21
    $region20: #{neural_net_forward.1} parent=1 // pred_region
      _
    $region21: #{neural_net_forward.1} parent=1 // pred_fallthru
      _
    // Predicated region
    $region22: #{neural_net_forward.1} parent=1 // pred_check
      _
    $region23: #{neural_net_forward.1} parent=1 // pred_check_branch
      %45 = sbr.rel (0) target = $region25
    $region24: #{neural_net_forward.1} parent=1 // pred_region
      %47 = dma.done [#allocation4], 1024
    $region25: #{neural_net_forward.1} parent=1 // pred_fallthru
      _
    // Predicated region
    $region26: #{neural_net_forward.1} parent=1 // pred_check
      _
    $region27: #{neural_net_forward.1} parent=1 // pred_check_branch
      %49 = sbr.rel (0) target = $region29
    $region28: #{neural_net_forward.1} parent=1 // pred_region
      %51 = dma.done [#allocation6], 1024
    $region29: #{neural_net_forward.1} parent=1 // pred_fallthru
      _
    %p52 = scmp.eq.s32.totalorder 0, 0
    // Predicated region
    $region30: #{neural_net_forward.1} parent=1 // pred_check
      %p53 = pneg %p52
    $region31: #{neural_net_forward.1} parent=1 // pred_check_branch
      %55 = sbr.rel (%p53) target = $region33
    $region32: #{neural_net_forward.1} parent=1 // pred_region
      %56 = vst [vmem:[#allocation2] sm:$0xff] 0.0
    $region33: #{neural_net_forward.1} parent=1 // pred_fallthru
      _
    %v57 = vld [vmem:[%s0] sm:$0xf]
    %v58 = vld [vmem:[#allocation3] sm:$0xf]
    %v59 = vld [vmem:[#allocation3 + $0x4] sm:$0xf]
    %v60 = vld [vmem:[#allocation3 + $0x8] sm:$0xf]
    %v61 = vld [vmem:[#allocation3 + $0xc] sm:$0xf]
    %v62 = vld [vmem:[#allocation3 + $0x10] sm:$0xf]
    %v63 = vld [vmem:[#allocation3 + $0x14] sm:$0xf]
    %v64 = vld [vmem:[#allocation3 + $0x18] sm:$0xf]
    %v65 = vld [vmem:[#allocation3 + $0x1c] sm:$0xf]
    %v66 = vld [vmem:[#allocation3 + $0x20] sm:$0xf]
    %v67 = vld [vmem:[#allocation3 + $0x24] sm:$0xf]
    %v68 = vld [vmem:[#allocation3 + $0x28] sm:$0xf]
    %v69 = vld [vmem:[#allocation3 + $0x2c] sm:$0xf]
    %v70 = vld [vmem:[#allocation3 + $0x30] sm:$0xf]
    %v71 = vld [vmem:[#allocation3 + $0x34] sm:$0xf]
    %v72 = vld [vmem:[#allocation3 + $0x38] sm:$0xf]
    %v73 = vld [vmem:[#allocation3 + $0x3c] sm:$0xf]
    %v74 = vld [vmem:[%s2] sm:$0x1]
    %v76 = vperm.slane %v74, 0
    %v94 = vunpack.c.l.b16 %v58
    %v95 = vunpack.c.l.b16 %v59
    %v96 = vunpack.c.l.b16 %v60
    %v97 = vunpack.c.l.b16 %v61
    %v98 = vunpack.c.l.b16 %v62
    %v99 = vunpack.c.l.b16 %v63
    %v100 = vunpack.c.l.b16 %v64
    %v101 = vunpack.c.l.b16 %v65
    %v102 = vunpack.c.l.b16 %v66
    %v103 = vunpack.c.l.b16 %v67
    %v104 = vunpack.c.l.b16 %v68
    %v105 = vunpack.c.l.b16 %v69
    %v106 = vunpack.c.l.b16 %v70
    %v107 = vunpack.c.l.b16 %v71
    %v108 = vunpack.c.l.b16 %v72
    %v109 = vunpack.c.l.b16 %v73
    %v110 = vpack.c.b16 %v95, %v94
    %v111 = vpack.c.b16 %v97, %v96
    %v112 = vpack.c.b16 %v99, %v98
    %v113 = vpack.c.b16 %v101, %v100
    %v114 = vpack.c.b16 %v103, %v102
    %v115 = vpack.c.b16 %v105, %v104
    %v116 = vpack.c.b16 %v107, %v106
    %v117 = vpack.c.b16 %v109, %v108
    %126 = vmatpush.bf16.msra.mxu0 %v117
    %127 = vmatpush.bf16.msra.mxu0 %v116
    %128 = vmatpush.bf16.msra.mxu0 %v115
    %129 = vmatpush.bf16.msra.mxu0 %v114
    %130 = vmatpush.bf16.msra.mxu0 %v113
    %131 = vmatpush.bf16.msra.mxu0 %v112
    %132 = vmatpush.bf16.msra.mxu0 %v111
    %133 = vmatpush.bf16.msra.mxu0 %v110
    %134 = vmatmul.bf16.gmra.mxu0 %v57
    %v135 = vpop.f32.mrf.mxu0
    %v136 = vadd.f32 %v76, %v135
    %v137 = vpop.f32.mrf.mxu0
    %138 = vdwg.mxu0
    %v139 = vmax.f32 %v136, 0.0
    %v140 = vld [vmem:[#allocation2] sm:$0xff]
    %v141 = vpack.c.bf16 %v139, %v139
    %v142 = vld [vmem:[#allocation5] sm:$0xf]
    %v143 = vld [vmem:[#allocation5 + $0x4] sm:$0xf]
    %v144 = vld [vmem:[#allocation5 + $0x8] sm:$0xf]
    %v145 = vld [vmem:[#allocation5 + $0xc] sm:$0xf]
    %v146 = vld [vmem:[#allocation5 + $0x10] sm:$0xf]
    %v147 = vld [vmem:[#allocation5 + $0x14] sm:$0xf]
    %v148 = vld [vmem:[#allocation5 + $0x18] sm:$0xf]
    %v149 = vld [vmem:[#allocation5 + $0x1c] sm:$0xf]
    %v150 = vld [vmem:[#allocation5 + $0x20] sm:$0xf]
    %v151 = vld [vmem:[#allocation5 + $0x24] sm:$0xf]
    %v152 = vld [vmem:[#allocation5 + $0x28] sm:$0xf]
    %v153 = vld [vmem:[#allocation5 + $0x2c] sm:$0xf]
    %v154 = vld [vmem:[#allocation5 + $0x30] sm:$0xf]
    %v155 = vld [vmem:[#allocation5 + $0x34] sm:$0xf]
    %v156 = vld [vmem:[#allocation5 + $0x38] sm:$0xf]
    %v157 = vld [vmem:[#allocation5 + $0x3c] sm:$0xf]
    %v174 = vunpack.c.l.b16 %v142
    %v175 = vunpack.c.l.b16 %v143
    %v176 = vunpack.c.l.b16 %v144
    %v177 = vunpack.c.l.b16 %v145
    %v178 = vunpack.c.l.b16 %v146
    %v179 = vunpack.c.l.b16 %v147
    %v180 = vunpack.c.l.b16 %v148
    %v181 = vunpack.c.l.b16 %v149
    %v182 = vunpack.c.l.b16 %v150
    %v183 = vunpack.c.l.b16 %v151
    %v184 = vunpack.c.l.b16 %v152
    %v185 = vunpack.c.l.b16 %v153
    %v186 = vunpack.c.l.b16 %v154
    %v187 = vunpack.c.l.b16 %v155
    %v188 = vunpack.c.l.b16 %v156
    %v189 = vunpack.c.l.b16 %v157
    %v190 = vpack.c.b16 %v175, %v174
    %v191 = vpack.c.b16 %v177, %v176
    %v192 = vpack.c.b16 %v179, %v178
    %v193 = vpack.c.b16 %v181, %v180
    %v194 = vpack.c.b16 %v183, %v182
    %v195 = vpack.c.b16 %v185, %v184
    %v196 = vpack.c.b16 %v187, %v186
    %v197 = vpack.c.b16 %v189, %v188
    %206 = vmatpush.bf16.msra.mxu0 %v197
    %207 = vmatpush.bf16.msra.mxu0 %v196
    %208 = vmatpush.bf16.msra.mxu0 %v195
    %209 = vmatpush.bf16.msra.mxu0 %v194
    %210 = vmatpush.bf16.msra.mxu0 %v193
    %211 = vmatpush.bf16.msra.mxu0 %v192
    %212 = vmatpush.bf16.msra.mxu0 %v191
    %213 = vmatpush.bf16.msra.mxu0 %v190
    %214 = vmatmul.bf16.gmra.mxu0 %v141
    %v215 = vpop.f32.mrf.mxu0
    %v216 = vadd.f32 0.0, %v215
    %v217 = vpop.f32.mrf.mxu0
    %218 = vdwg.mxu0
    %v219 = vadd.f32 %v140, %v216
    %220 = vst [vmem:[#allocation2] sm:$0xff] %v219
    // Predicated region
    $region34: #{neural_net_forward.1} parent=1 // pred_check
      %p221 = pneg %p52
    $region35: #{neural_net_forward.1} parent=1 // pred_check_branch
      %223 = sbr.rel (%p221) target = $region37
    $region36: #{neural_net_forward.1} parent=1 // pred_region
      %v224 = vld [vmem:[#allocation2] sm:$0xff]
      %v225 = vld [vmem:[%s4] sm:$0x1]
      %v227 = vperm.slane %v225, 0
      %v229 = vadd.f32 %v224, %v227
      %230 = vst [vmem:[%s5] sm:$0xff] %v229
    $region37: #{neural_net_forward.1} parent=1 // pred_fallthru
      _
    // Predicated region
    $region38: #{neural_net_forward.1} parent=1 // pred_check
      _
    $region39: #{neural_net_forward.1} parent=1 // pred_check_branch
      %232 = sbr.rel (0) target = $region41
    $region40: #{neural_net_forward.1} parent=1 // pred_region
      _
    $region41: #{neural_net_forward.1} parent=1 // pred_fallthru
      _
    // Predicated region
    $region42: #{neural_net_forward.1} parent=1 // pred_check
      _
    $region43: #{neural_net_forward.1} parent=1 // pred_check_branch
      %234 = sbr.rel (0) target = $region45
    $region44: #{neural_net_forward.1} parent=1 // pred_region
      _
    $region45: #{neural_net_forward.1} parent=1 // pred_fallthru
      _
    %235 = vsyncpa [#allocation4], 1
    %236 = vsyncpa [#allocation6], 1

</llo_original>
